<compile_context>
chip_gen: v5e
topology: v5e:2x2
jax: 0.10.0
libtpu: 0.0.40
codegen_flags: <defaults>
</compile_context>

<pallas_src>
import functools
import math

import jax
import jax.numpy as jnp
from jax.experimental import pallas as pl
from jax.experimental.pallas import tpu as pltpu


_LANE = 128        # vreg lane width (last dim)
_SUBLANE = 8       # f32 sublane count (second-to-last dim)
_NEG_SLOPE = 0.4   # LeakyReLU negative_slope from the module spec


def _round_up(n, m):
    return ((n + m - 1) // m) * m


def _make_decoder_kernel(n_layers):
    """Fused kernel: x -> [Linear + LeakyReLU(0.4)]*(n-1) -> Linear + Sigmoid."""

    def kernel(x_ref, *refs):
        # refs = (w0, b0, w1, b1, ..., w_{n-1}, b_{n-1}, o_ref)
        o_ref = refs[-1]
        h = x_ref[...].astype(jnp.float32)
        for i in range(n_layers):
            w = refs[2 * i][...]
            b = refs[2 * i + 1][...]          # (1, Dout_pad) broadcasts over rows
            h = jnp.dot(h, w, preferred_element_type=jnp.float32) + b
            if i < n_layers - 1:
                h = jnp.where(h >= 0, h, _NEG_SLOPE * h)   # LeakyReLU(0.4)
            else:
                h = jax.nn.sigmoid(h)                       # final Sigmoid
        o_ref[...] = h.astype(o_ref.dtype)

    return kernel


def decoder_forward(params, x, *, block_batch=512):
    """params: list of (w: (Din, Dout), b: (Dout,)). x: (B, dims[0])."""
    B, din0 = x.shape
    n_layers = len(params)
    out_dim = params[-1][0].shape[1]

    # ---- pad weights/biases so every lane (feature) dim is a multiple of 128.
    # Input feature dim stays unpadded (block last-dim == full array dim is OK)
    # to avoid inflating the x DMA traffic.
    flat = []
    prev_p = din0
    for (w, b) in params:
        din, dout = w.shape
        dout_p = _round_up(dout, _LANE)
        w_p = jnp.zeros((prev_p, dout_p), w.dtype).at[:din, :dout].set(w)
        b_p = jnp.zeros((1, dout_p), b.dtype).at[0, :dout].set(b)
        flat.extend([w_p, b_p])
        prev_p = dout_p
    out_dim_p = prev_p

    # ---- batch tiling: big tiles (<= block_batch rows), grid over batch only.
    tb = min(_round_up(B, _SUBLANE), _round_up(block_batch, _SUBLANE))
    b_pad = _round_up(B, tb)
    x_p = x if b_pad == B else jnp.zeros((b_pad, din0), x.dtype).at[:B].set(x)
    grid = (b_pad // tb,)

    in_specs = [pl.BlockSpec((tb, din0), lambda i: (i, 0))]
    for li in range(n_layers):
        # Weights / biases: full-array blocks, constant index -> VMEM-resident.
        in_specs.append(pl.BlockSpec(flat[2 * li].shape, lambda i: (0, 0)))
        in_specs.append(pl.BlockSpec(flat[2 * li + 1].shape, lambda i: (0, 0)))

    out = pl.pallas_call(
        _make_decoder_kernel(n_layers),
        out_shape=jax.ShapeDtypeStruct((b_pad, out_dim_p), x.dtype),
        grid=grid,
        in_specs=in_specs,
        out_specs=pl.BlockSpec((tb, out_dim_p), lambda i: (i, 0)),
        compiler_params=pltpu.CompilerParams(
            dimension_semantics=("parallel",)),  # megacore sharding on v7x
    )(x_p, *flat)

    return out[:B, :out_dim]


def init_decoder_params(key, output_dim, dims):
    """Deterministic xavier_uniform weights + zero biases, matching the module."""
    layer_dims = list(zip(dims[:-1], dims[1:])) + [(dims[-1], output_dim)]
    params = []
    for (din, dout) in layer_dims:
        key, sub = jax.random.split(key)
        # xavier_uniform bound is symmetric in (fan_in, fan_out), so the
        # (din, dout) layout uses the same bound as torch's (dout, din) weight.
        bound = math.sqrt(6.0 / (din + dout))
        w = jax.random.uniform(sub, (din, dout), jnp.float32, -bound, bound)
        b = jnp.zeros((dout,), jnp.float32)
        params.append((w, b))
    return params


def decoder_reference(params, x):
    """Pure-JAX reference for a correctness check."""
    n = len(params)
    for i, (w, b) in enumerate(params):
        y = x @ w + b
        x = jax.nn.sigmoid(y) if i == n - 1 else jnp.where(y >= 0, y, _NEG_SLOPE * y)
    return x


if __name__ == "__main__":
    # Decoder(output_dim=16, dims=(32, 64, 48)):
    #   Dense(32->64, LeakyReLU 0.4), Dense(64->48, LeakyReLU 0.4),
    #   Dense(48->16, Sigmoid)
    output_dim = 16
    dims = (32, 64, 48)
    batch = 16

    key = jax.random.PRNGKey(0)
    key, xkey = jax.random.split(key)
    x = jax.random.normal(xkey, (batch, dims[0]), jnp.float32)

    params = init_decoder_params(key, output_dim, dims)

    # block_batch=8 exercises the multi-step batch grid even at this tiny size
    # (weights stay VMEM-resident across steps); default 512 for real batches.
    fwd = jax.jit(functools.partial(decoder_forward, block_batch=8))
    out = jax.block_until_ready(fwd(params, x))

    ref = decoder_reference(params, x)
    assert out.shape == (batch, output_dim), out.shape
    assert jnp.allclose(out, ref, atol=1e-5, rtol=1e-5), \
        float(jnp.max(jnp.abs(out - ref)))

    print("KERNEL_OK")
</pallas_src>

<mosaic_0001>
module attributes {stable_mosaic.version = 11 : i64} {
  func.func @kernel(%arg0: i32, %arg1: memref<8x32xf32, #tpu.memory_space<vmem>>, %arg2: memref<32x128xf32, #tpu.memory_space<vmem>>, %arg3: memref<1x128xf32, #tpu.memory_space<vmem>>, %arg4: memref<128x128xf32, #tpu.memory_space<vmem>>, %arg5: memref<1x128xf32, #tpu.memory_space<vmem>>, %arg6: memref<128x128xf32, #tpu.memory_space<vmem>>, %arg7: memref<1x128xf32, #tpu.memory_space<vmem>>, %arg8: memref<8x128xf32, #tpu.memory_space<vmem>>) attributes {dimension_semantics = [#tpu.dimension_semantics<parallel>], iteration_bounds = array<i64: 2>, scalar_prefetch = 0 : i64, scratch_operands = 0 : i64, tpu.core_type = #tpu.core_type<tc>, window_params = [{transform_indices = @transform_0, window_bounds = array<i64: 8, 32>}, {pipeline_mode = #tpu.pipeline_mode<synchronous>, transform_indices = @transform_1, window_bounds = array<i64: 32, 128>}, {pipeline_mode = #tpu.pipeline_mode<synchronous>, transform_indices = @transform_2, window_bounds = array<i64: 1, 128>}, {pipeline_mode = #tpu.pipeline_mode<synchronous>, transform_indices = @transform_3, window_bounds = array<i64: 128, 128>}, {pipeline_mode = #tpu.pipeline_mode<synchronous>, transform_indices = @transform_4, window_bounds = array<i64: 1, 128>}, {pipeline_mode = #tpu.pipeline_mode<synchronous>, transform_indices = @transform_5, window_bounds = array<i64: 128, 128>}, {pipeline_mode = #tpu.pipeline_mode<synchronous>, transform_indices = @transform_6, window_bounds = array<i64: 1, 128>}, {transform_indices = @transform_7, window_bounds = array<i64: 8, 128>}]} {
    %c0 = arith.constant 0 : index
    %c0_0 = arith.constant 0 : index
    %0 = vector.load %arg1[%c0, %c0_0] : memref<8x32xf32, #tpu.memory_space<vmem>>, vector<8x32xf32>
    %c0_1 = arith.constant 0 : index
    %c0_2 = arith.constant 0 : index
    %1 = vector.load %arg2[%c0_1, %c0_2] : memref<32x128xf32, #tpu.memory_space<vmem>>, vector<32x128xf32>
    %c0_3 = arith.constant 0 : index
    %c0_4 = arith.constant 0 : index
    %2 = vector.load %arg3[%c0_3, %c0_4] : memref<1x128xf32, #tpu.memory_space<vmem>>, vector<1x128xf32>
    %cst = arith.constant dense<0.000000e+00> : vector<8x128xf32>
    %3 = tpu.matmul %0, %1, %cst {dimension_numbers = #tpu.dot_dimension_numbers<[1], [0], [0], [1], [0, 0, 1, 1], [], []>} : vector<8x32xf32>, vector<32x128xf32>, vector<8x128xf32> -> vector<8x128xf32>
    %4 = vector.broadcast %2 : vector<1x128xf32> to vector<8x128xf32>
    %5 = arith.addf %3, %4 : vector<8x128xf32>
    %cst_5 = arith.constant 0.000000e+00 : f32
    %6 = vector.broadcast %cst_5 : f32 to vector<8x128xf32>
    %7 = arith.cmpf oge, %5, %6 : vector<8x128xf32>
    %cst_6 = arith.constant 4.000000e-01 : f32
    %8 = vector.broadcast %cst_6 : f32 to vector<8x128xf32>
    %9 = arith.mulf %8, %5 : vector<8x128xf32>
    %10 = arith.select %7, %5, %9 : vector<8x128xi1>, vector<8x128xf32>
    %c0_7 = arith.constant 0 : index
    %c0_8 = arith.constant 0 : index
    %11 = vector.load %arg4[%c0_7, %c0_8] : memref<128x128xf32, #tpu.memory_space<vmem>>, vector<128x128xf32>
    %c0_9 = arith.constant 0 : index
    %c0_10 = arith.constant 0 : index
    %12 = vector.load %arg5[%c0_9, %c0_10] : memref<1x128xf32, #tpu.memory_space<vmem>>, vector<1x128xf32>
    %cst_11 = arith.constant dense<0.000000e+00> : vector<8x128xf32>
    %13 = tpu.matmul %10, %11, %cst_11 {dimension_numbers = #tpu.dot_dimension_numbers<[1], [0], [0], [1], [0, 0, 1, 1], [], []>} : vector<8x128xf32>, vector<128x128xf32>, vector<8x128xf32> -> vector<8x128xf32>
    %14 = vector.broadcast %12 : vector<1x128xf32> to vector<8x128xf32>
    %15 = arith.addf %13, %14 : vector<8x128xf32>
    %cst_12 = arith.constant 0.000000e+00 : f32
    %16 = vector.broadcast %cst_12 : f32 to vector<8x128xf32>
    %17 = arith.cmpf oge, %15, %16 : vector<8x128xf32>
    %cst_13 = arith.constant 4.000000e-01 : f32
    %18 = vector.broadcast %cst_13 : f32 to vector<8x128xf32>
    %19 = arith.mulf %18, %15 : vector<8x128xf32>
    %20 = arith.select %17, %15, %19 : vector<8x128xi1>, vector<8x128xf32>
    %c0_14 = arith.constant 0 : index
    %c0_15 = arith.constant 0 : index
    %21 = vector.load %arg6[%c0_14, %c0_15] : memref<128x128xf32, #tpu.memory_space<vmem>>, vector<128x128xf32>
    %c0_16 = arith.constant 0 : index
    %c0_17 = arith.constant 0 : index
    %22 = vector.load %arg7[%c0_16, %c0_17] : memref<1x128xf32, #tpu.memory_space<vmem>>, vector<1x128xf32>
    %cst_18 = arith.constant dense<0.000000e+00> : vector<8x128xf32>
    %23 = tpu.matmul %20, %21, %cst_18 {dimension_numbers = #tpu.dot_dimension_numbers<[1], [0], [0], [1], [0, 0, 1, 1], [], []>} : vector<8x128xf32>, vector<128x128xf32>, vector<8x128xf32> -> vector<8x128xf32>
    %24 = vector.broadcast %22 : vector<1x128xf32> to vector<8x128xf32>
    %25 = arith.addf %23, %24 : vector<8x128xf32>
    %26 = arith.negf %25 : vector<8x128xf32>
    %27 = math.exp %26 : vector<8x128xf32>
    %cst_19 = arith.constant 1.000000e+00 : f32
    %28 = vector.broadcast %cst_19 : f32 to vector<8x128xf32>
    %29 = arith.addf %28, %27 : vector<8x128xf32>
    %30 = arith.divf %28, %29 : vector<8x128xf32>
    %c0_20 = arith.constant 0 : index
    %c0_21 = arith.constant 0 : index
    %31 = vector.load %arg8[%c0_20, %c0_21] : memref<8x128xf32, #tpu.memory_space<vmem>>, vector<8x128xf32>
    tpu.vector_store %arg8[%c0_20, %c0_21], %30 {strides = array<i32>} : memref<8x128xf32, #tpu.memory_space<vmem>>, vector<8x128xf32>,
    return
  }
  func.func @transform_0(%arg0: i32) -> (i32, i32) {
    %c0_i32 = arith.constant 0 : i32
    %c0_i32_0 = arith.constant 0 : i32
    return %arg0, %c0_i32 : i32, i32
  }
  func.func @transform_1(%arg0: i32) -> (i32, i32) {
    %c0_i32 = arith.constant 0 : i32
    %c0_i32_0 = arith.constant 0 : i32
    %c0_i32_1 = arith.constant 0 : i32
    return %c0_i32, %c0_i32_0 : i32, i32
  }
  func.func @transform_2(%arg0: i32) -> (i32, i32) {
    %c0_i32 = arith.constant 0 : i32
    %c0_i32_0 = arith.constant 0 : i32
    %c0_i32_1 = arith.constant 0 : i32
    return %c0_i32, %c0_i32_0 : i32, i32
  }
  func.func @transform_3(%arg0: i32) -> (i32, i32) {
    %c0_i32 = arith.constant 0 : i32
    %c0_i32_0 = arith.constant 0 : i32
    %c0_i32_1 = arith.constant 0 : i32
    return %c0_i32, %c0_i32_0 : i32, i32
  }
  func.func @transform_4(%arg0: i32) -> (i32, i32) {
    %c0_i32 = arith.constant 0 : i32
    %c0_i32_0 = arith.constant 0 : i32
    %c0_i32_1 = arith.constant 0 : i32
    return %c0_i32, %c0_i32_0 : i32, i32
  }
  func.func @transform_5(%arg0: i32) -> (i32, i32) {
    %c0_i32 = arith.constant 0 : i32
    %c0_i32_0 = arith.constant 0 : i32
    %c0_i32_1 = arith.constant 0 : i32
    return %c0_i32, %c0_i32_0 : i32, i32
  }
  func.func @transform_6(%arg0: i32) -> (i32, i32) {
    %c0_i32 = arith.constant 0 : i32
    %c0_i32_0 = arith.constant 0 : i32
    %c0_i32_1 = arith.constant 0 : i32
    return %c0_i32, %c0_i32_0 : i32, i32
  }
  func.func @transform_7(%arg0: i32) -> (i32, i32) {
    %c0_i32 = arith.constant 0 : i32
    %c0_i32_0 = arith.constant 0 : i32
    return %arg0, %c0_i32 : i32, i32
  }
}

</mosaic_0001>

<llo_original>
// kernel: decoder_forward.1
$region0: #{decoder_forward.1}
  #allocation0 [shape = 'u32[]', space=smem, size = 0x4, offset = 0x4, fixed_abs, tag = 'smem constant byte address 0x4 - core index']
  #allocation1 [shape = 'u32[72,128]{1,0:T(1,128)}', space=vmem, size = 0x9000, scoped, tag = 'internal scratch']
  %s0 = inlined_call_operand.vmem [shape: f32[16,32], index: 0, kind: input, shape index: {}]
  %s1 = inlined_call_operand.vmem [shape: f32[32,128], index: 1, kind: input, shape index: {}]
  %s2 = inlined_call_operand.vmem [shape: f32[1,128], index: 2, kind: input, shape index: {}]
  %s3 = inlined_call_operand.vmem [shape: f32[128,128], index: 3, kind: input, shape index: {}]
  %s4 = inlined_call_operand.vmem [shape: f32[1,128], index: 4, kind: input, shape index: {}]
  %s5 = inlined_call_operand.vmem [shape: f32[128,128], index: 5, kind: input, shape index: {}]
  %s6 = inlined_call_operand.vmem [shape: f32[1,128], index: 6, kind: input, shape index: {}]
  %s7 = inlined_call_operand.hbm [shape: f32[16,128], index: 7, kind: output, shape index: {}]
  %s8 = sld [smem:[#allocation0]]
  $region61: #{decoder_forward.1} parent=0
    _
  %s10 = ssub.s32 1, %s8
  %s11 = scalar_select 0, %s10, %s8
  $region1: #{decoder_forward.1} parent=0
    #allocation2 [shape = 'u8[8192]{0}', space=vmem, size = 0x2000, scoped, tag = 'output window, operand 0']
    #allocation3 [shape = 's32[2]{0}', space=sflag, size = 0x8, scoped, tag = 'scoped memory for decoder_forward.1']
    %12 = vsyncpa [#allocation3], 0
    %s13 = scalar_lea.sflag [#allocation3], 1
    %14 = vsyncpa %s13, 0
    loop: start=0, step=1, limit=4
    $region2: #{decoder_forward.1} parent=1 // loop_pre_header
      _
    $region3: #{decoder_forward.1} parent=1 // loop_header
      %s16 = sphi 0, %s20
      %p17 = scmp.ge.s32.totalorder %s16, 4
      %s26 = sphi 0, %s28
      %s29 = sphi 0, %s26
      %s30 = sphi 0, %s29
      %s46 = sphi 0, %s30
      %s50 = sphi 0, %s50
      %s52 = sphi 0, %s50
      %s53 = sphi 0, %s52
      %s67 = sphi 0, %s53
      %s71 = sphi 0, %s71
      %s73 = sphi 0, %s71
      %s74 = sphi 0, %s73
      %s88 = sphi 0, %s74
      %s92 = sphi 0, %s92
      %s94 = sphi 0, %s92
      %s95 = sphi 0, %s94
      %s109 = sphi 0, %s95
      %s113 = sphi 0, %s113
      %s115 = sphi 0, %s113
      %s116 = sphi 0, %s115
      %s130 = sphi 0, %s116
      %s134 = sphi 0, %s134
      %s136 = sphi 0, %s134
      %s137 = sphi 0, %s136
      %s151 = sphi 0, %s137
      %s155 = sphi 0, %s155
      %s157 = sphi 0, %s155
      %s158 = sphi 0, %s157
      %s172 = sphi 0, %s158
      %s178 = sphi 0, %s180
      %s181 = sphi 0, %s178
      %s182 = sphi 0, %s181
      %s198 = sphi 0, %s182
    $region4: #{decoder_forward.1} parent=1 // loop_header_branch
      %19 = sbr.rel (%p17) target = $region8
    $region5: #{decoder_forward.1} parent=1 // loop_body
      %s21 = ssub.s32 %s16, 1
      %s22 = ssub.s32 %s16, 2
      %s23 = sadd.s32 %s16, 1
      %s24 = ssub.s32 %s16, %s23
      %p25 = scmp.eq.s32.totalorder %s24, 0
      %s27 = sadd.s32 %s26, 1
      %s28 = scalar_select %p25, %s26, %s27
      %p31 = pneg %p25
      %p32 = scmp.eq.s32.totalorder %s16, 1
      %p33 = por %p31, %p32
      %p34 = scmp.ne.s32.totalorder %s26, %s29
      %p35 = scmp.eq.s32.totalorder %s16, 0
      %p36 = por %p34, %p35
      %p37 = scmp.ne.s32.totalorder %s26, %s29
      %p38 = scmp.eq.s32.totalorder %s21, 1
      %p39 = por %p37, %p38
      %p40 = scmp.ne.s32.totalorder %s29, %s30
      %p41 = scmp.eq.s32.totalorder %s21, 0
      %p42 = por %p40, %p41
      %p43 = scmp.ne.s32.totalorder %s29, %s30
      %p44 = scmp.eq.s32.totalorder %s22, 1
      %p45 = por %p43, %p44
      %p47 = scmp.ne.s32.totalorder %s30, %s46
      %p48 = scmp.eq.s32.totalorder %s22, 0
      %p49 = por %p47, %p48
      %s51 = sadd.s32 %s50, 1
      %p54 = scmp.eq.s32.totalorder %s16, 1
      %p55 = scmp.ne.s32.totalorder %s50, %s52
      %p56 = scmp.eq.s32.totalorder %s16, 0
      %p57 = por %p55, %p56
      %p58 = scmp.ne.s32.totalorder %s50, %s52
      %p59 = scmp.eq.s32.totalorder %s21, 1
      %p60 = por %p58, %p59
      %p61 = scmp.ne.s32.totalorder %s52, %s53
      %p62 = scmp.eq.s32.totalorder %s21, 0
      %p63 = por %p61, %p62
      %p64 = scmp.ne.s32.totalorder %s52, %s53
      %p65 = scmp.eq.s32.totalorder %s22, 1
      %p66 = por %p64, %p65
      %p68 = scmp.ne.s32.totalorder %s53, %s67
      %p69 = scmp.eq.s32.totalorder %s22, 0
      %p70 = por %p68, %p69
      %s72 = sadd.s32 %s71, 1
      %p75 = scmp.eq.s32.totalorder %s16, 1
      %p76 = scmp.ne.s32.totalorder %s71, %s73
      %p77 = scmp.eq.s32.totalorder %s16, 0
      %p78 = por %p76, %p77
      %p79 = scmp.ne.s32.totalorder %s71, %s73
      %p80 = scmp.eq.s32.totalorder %s21, 1
      %p81 = por %p79, %p80
      %p82 = scmp.ne.s32.totalorder %s73, %s74
      %p83 = scmp.eq.s32.totalorder %s21, 0
      %p84 = por %p82, %p83
      %p85 = scmp.ne.s32.totalorder %s73, %s74
      %p86 = scmp.eq.s32.totalorder %s22, 1
      %p87 = por %p85, %p86
      %p89 = scmp.ne.s32.totalorder %s74, %s88
      %p90 = scmp.eq.s32.totalorder %s22, 0
      %p91 = por %p89, %p90
      %s93 = sadd.s32 %s92, 1
      %p96 = scmp.eq.s32.totalorder %s16, 1
      %p97 = scmp.ne.s32.totalorder %s92, %s94
      %p98 = scmp.eq.s32.totalorder %s16, 0
      %p99 = por %p97, %p98
      %p100 = scmp.ne.s32.totalorder %s92, %s94
      %p101 = scmp.eq.s32.totalorder %s21, 1
      %p102 = por %p100, %p101
      %p103 = scmp.ne.s32.totalorder %s94, %s95
      %p104 = scmp.eq.s32.totalorder %s21, 0
      %p105 = por %p103, %p104
      %p106 = scmp.ne.s32.totalorder %s94, %s95
      %p107 = scmp.eq.s32.totalorder %s22, 1
      %p108 = por %p106, %p107
      %p110 = scmp.ne.s32.totalorder %s95, %s109
      %p111 = scmp.eq.s32.totalorder %s22, 0
      %p112 = por %p110, %p111
      %s114 = sadd.s32 %s113, 1
      %p117 = scmp.eq.s32.totalorder %s16, 1
      %p118 = scmp.ne.s32.totalorder %s113, %s115
      %p119 = scmp.eq.s32.totalorder %s16, 0
      %p120 = por %p118, %p119
      %p121 = scmp.ne.s32.totalorder %s113, %s115
      %p122 = scmp.eq.s32.totalorder %s21, 1
      %p123 = por %p121, %p122
      %p124 = scmp.ne.s32.totalorder %s115, %s116
      %p125 = scmp.eq.s32.totalorder %s21, 0
      %p126 = por %p124, %p125
      %p127 = scmp.ne.s32.totalorder %s115, %s116
      %p128 = scmp.eq.s32.totalorder %s22, 1
      %p129 = por %p127, %p128
      %p131 = scmp.ne.s32.totalorder %s116, %s130
      %p132 = scmp.eq.s32.totalorder %s22, 0
      %p133 = por %p131, %p132
      %s135 = sadd.s32 %s134, 1
      %p138 = scmp.eq.s32.totalorder %s16, 1
      %p139 = scmp.ne.s32.totalorder %s134, %s136
      %p140 = scmp.eq.s32.totalorder %s16, 0
      %p141 = por %p139, %p140
      %p142 = scmp.ne.s32.totalorder %s134, %s136
      %p143 = scmp.eq.s32.totalorder %s21, 1
      %p144 = por %p142, %p143
      %p145 = scmp.ne.s32.totalorder %s136, %s137
      %p146 = scmp.eq.s32.totalorder %s21, 0
      %p147 = por %p145, %p146
      %p148 = scmp.ne.s32.totalorder %s136, %s137
      %p149 = scmp.eq.s32.totalorder %s22, 1
      %p150 = por %p148, %p149
      %p152 = scmp.ne.s32.totalorder %s137, %s151
      %p153 = scmp.eq.s32.totalorder %s22, 0
      %p154 = por %p152, %p153
      %s156 = sadd.s32 %s155, 1
      %p159 = scmp.eq.s32.totalorder %s16, 1
      %p160 = scmp.ne.s32.totalorder %s155, %s157
      %p161 = scmp.eq.s32.totalorder %s16, 0
      %p162 = por %p160, %p161
      %p163 = scmp.ne.s32.totalorder %s155, %s157
      %p164 = scmp.eq.s32.totalorder %s21, 1
      %p165 = por %p163, %p164
      %p166 = scmp.ne.s32.totalorder %s157, %s158
      %p167 = scmp.eq.s32.totalorder %s21, 0
      %p168 = por %p166, %p167
      %p169 = scmp.ne.s32.totalorder %s157, %s158
      %p170 = scmp.eq.s32.totalorder %s22, 1
      %p171 = por %p169, %p170
      %p173 = scmp.ne.s32.totalorder %s158, %s172
      %p174 = scmp.eq.s32.totalorder %s22, 0
      %p175 = por %p173, %p174
      %s176 = ssub.s32 %s16, %s23
      %p177 = scmp.eq.s32.totalorder %s176, 0
      %s179 = sadd.s32 %s178, 1
      %s180 = scalar_select %p177, %s178, %s179
      %p183 = pneg %p177
      %p184 = scmp.eq.s32.totalorder %s16, 1
      %p185 = por %p183, %p184
      %p186 = scmp.ne.s32.totalorder %s178, %s181
      %p187 = scmp.eq.s32.totalorder %s16, 0
      %p188 = por %p186, %p187
      %p189 = scmp.ne.s32.totalorder %s178, %s181
      %p190 = scmp.eq.s32.totalorder %s21, 1
      %p191 = por %p189, %p190
      %p192 = scmp.ne.s32.totalorder %s181, %s182
      %p193 = scmp.eq.s32.totalorder %s21, 0
      %p194 = por %p192, %p193
      %p195 = scmp.ne.s32.totalorder %s181, %s182
      %p196 = scmp.eq.s32.totalorder %s22, 1
      %p197 = por %p195, %p196
      %p199 = scmp.ne.s32.totalorder %s182, %s198
      %p200 = scmp.eq.s32.totalorder %s22, 0
      %p201 = por %p199, %p200
      %p202 = scmp.le.s32.totalorder 1, %s16
      %p203 = scmp.lt.s32.totalorder %s16, 3
      %p204 = pnand %p202, %p203
      %p205 = pneg %p204
      // Predicated region
      $region9: #{decoder_forward.1} parent=5 // pred_check
        _
      $region10: #{decoder_forward.1} parent=5 // pred_check_branch
        %207 = sbr.rel (%p204) target = $region12
      $region11: #{decoder_forward.1} parent=5 // pred_region
        %s208 = ssub.s32 %s16, 1
        // Predicated region
        $region13: #{decoder_forward.1} parent=11 // pred_check
          %p209 = pneg %p63
        $region14: #{decoder_forward.1} parent=11 // pred_check_branch
          %211 = sbr.rel (%p209) target = $region16
        $region15: #{decoder_forward.1} parent=11 // pred_region
          _
        $region16: #{decoder_forward.1} parent=11 // pred_fallthru
          _
        // Predicated region
        $region17: #{decoder_forward.1} parent=11 // pred_check
          %p212 = pneg %p84
        $region18: #{decoder_forward.1} parent=11 // pred_check_branch
          %214 = sbr.rel (%p212) target = $region20
        $region19: #{decoder_forward.1} parent=11 // pred_region
          _
        $region20: #{decoder_forward.1} parent=11 // pred_fallthru
          _
        // Predicated region
        $region21: #{decoder_forward.1} parent=11 // pred_check
          %p215 = pneg %p105
        $region22: #{decoder_forward.1} parent=11 // pred_check_branch
          %217 = sbr.rel (%p215) target = $region24
        $region23: #{decoder_forward.1} parent=11 // pred_region
          _
        $region24: #{decoder_forward.1} parent=11 // pred_fallthru
          _
        // Predicated region
        $region25: #{decoder_forward.1} parent=11 // pred_check
          %p218 = pneg %p126
        $region26: #{decoder_forward.1} parent=11 // pred_check_branch
          %220 = sbr.rel (%p218) target = $region28
        $region27: #{decoder_forward.1} parent=11 // pred_region
          _
        $region28: #{decoder_forward.1} parent=11 // pred_fallthru
          _
        // Predicated region
        $region29: #{decoder_forward.1} parent=11 // pred_check
          %p221 = pneg %p147
        $region30: #{decoder_forward.1} parent=11 // pred_check_branch
          %223 = sbr.rel (%p221) target = $region32
        $region31: #{decoder_forward.1} parent=11 // pred_region
          _
        $region32: #{decoder_forward.1} parent=11 // pred_fallthru
          _
        // Predicated region
        $region33: #{decoder_forward.1} parent=11 // pred_check
          %p224 = pneg %p168
        $region34: #{decoder_forward.1} parent=11 // pred_check_branch
          %226 = sbr.rel (%p224) target = $region36
        $region35: #{decoder_forward.1} parent=11 // pred_region
          _
        $region36: #{decoder_forward.1} parent=11 // pred_fallthru
          _
      $region12: #{decoder_forward.1} parent=5 // pred_fallthru
        _
      %p227 = scmp.lt.s32.totalorder %s16, 2
      // Predicated region
      $region37: #{decoder_forward.1} parent=5 // pred_check
        %p228 = pneg %p227
      $region38: #{decoder_forward.1} parent=5 // pred_check_branch
        %230 = sbr.rel (%p228) target = $region40
      $region39: #{decoder_forward.1} parent=5 // pred_region
        // Predicated region
        $region41: #{decoder_forward.1} parent=39 // pred_check
          %p231 = pneg %p36
        $region42: #{decoder_forward.1} parent=39 // pred_check_branch
          %233 = sbr.rel (%p231) target = $region44
        $region43: #{decoder_forward.1} parent=39 // pred_region
          %p234 = scmp.lt.s32.totalorder %s16, 1
          %s235 = scalar_select %p234, %s16, 1
          %s236 = smul.addr %s235, 8
          %s237 = scalar_lea.vmem %s0, %s236
        $region44: #{decoder_forward.1} parent=39 // pred_fallthru
          _
      $region40: #{decoder_forward.1} parent=5 // pred_fallthru
        _
      %p238 = scmp.le.s32.totalorder 1, %s16
      %p239 = scmp.lt.s32.totalorder %s16, 3
      %p240 = pnand %p238, %p239
      %p241 = pneg %p240
      // Predicated region
      $region45: #{decoder_forward.1} parent=5 // pred_check
        _
      $region46: #{decoder_forward.1} parent=5 // pred_check_branch
        %243 = sbr.rel (%p240) target = $region48
      $region47: #{decoder_forward.1} parent=5 // pred_region
        %s244 = ssub.s32 %s16, 1
        %p245 = scmp.lt.s32.totalorder %s21, 1
        %s246 = scalar_select %p245, %s21, 1
        %s247 = smul.addr %s246, 8
        %s248 = scalar_lea.vmem %s0, %s247
        %p249 = pneg %p42
        %p250 = pneg %p39
        %p251 = pneg %p63
        %p252 = pneg %p60
        %p253 = pneg %p84
        %p254 = pneg %p81
        %p255 = pneg %p105
        %p256 = pneg %p102
        %p257 = pneg %p126
        %p258 = pneg %p123
        %p259 = pneg %p147
        %p260 = pneg %p144
        %p261 = pneg %p168
        %p262 = pneg %p165
        %p263 = pneg %p194
        %p264 = pneg %p191
        %s265 = sand.u32 %s181, 1
        %s266 = scalar_lea.sflag [#allocation3], %s265
        %s267 = sand.u32 %s181, 1
        %s268 = smul.addr %s267, 8
        %s269 = scalar_lea.vmem [#allocation2], %s268
        %p270 = scmp.lt.s32.totalorder %s21, 1
        %s271 = scalar_select %p270, %s21, 1
        %s272 = smul.addr %s271, 8
        %s273 = scalar_lea.vmem %s0, %s272
        %v274 = vld [vmem:[%s273] sm:$0xff]
        %v275 = vld [vmem:[%s1] sm:$0xff]
        %v276 = vld [vmem:[%s1 + $0x8] sm:$0xff]
        %v277 = vld [vmem:[%s1 + $0x10] sm:$0xff]
        %v278 = vld [vmem:[%s1 + $0x18] sm:$0xff]
        %v279 = vld [vmem:[%s2] sm:$0x1]
        %v281 = vperm.slane %v279, 0
        %vm283 = vcmask 261120
        %v285 = vsel %vm283, %v274, 0
        %287 = vmatpush.msra.mxu0 0.0
        %288 = vmatpush.msra.mxu0 0.0
        %289 = vmatpush.msra.mxu0 0.0
        %290 = vmatpush.msra.mxu0 0.0
        %291 = vmatpush.msra.mxu0 0.0
        %292 = vmatpush.msra.mxu0 0.0
        %293 = vmatpush.msra.mxu0 0.0
        %294 = vmatpush.msra.mxu0 0.0
        %295 = vmatpush.msra.mxu0 0.0
        %296 = vmatpush.msra.mxu0 0.0
        %297 = vmatpush.msra.mxu0 0.0
        %298 = vmatpush.msra.mxu0 0.0
        %299 = vmatpush.msra.mxu0 %v278
        %300 = vmatpush.msra.mxu0 %v277
        %301 = vmatpush.msra.mxu0 %v276
        %302 = vmatpush.msra.mxu0 %v275
        %303 = vmatmul.f32.gmra.mxu0 %v285
        %v304 = vpop.f32.mrf.mxu0
        %v305 = vadd.f32 %v281, %v304
        %306 = vdwg.mxu0
        %vm307 = vcmp.ge.f32.partialorder %v305, 0.0
        %v308 = vmul.f32 %v305, 0.4
        %v309 = vsel %vm307, %v305, %v308
        %v310 = vld [vmem:[%s3] sm:$0xff]
        %v311 = vld [vmem:[%s3 + $0x8] sm:$0xff]
        %v312 = vld [vmem:[%s3 + $0x10] sm:$0xff]
        %v313 = vld [vmem:[%s3 + $0x18] sm:$0xff]
        %v314 = vld [vmem:[%s3 + $0x20] sm:$0xff]
        %v315 = vld [vmem:[%s3 + $0x28] sm:$0xff]
        %v316 = vld [vmem:[%s3 + $0x30] sm:$0xff]
        %v317 = vld [vmem:[%s3 + $0x38] sm:$0xff]
        %v318 = vld [vmem:[%s3 + $0x40] sm:$0xff]
        %v319 = vld [vmem:[%s3 + $0x48] sm:$0xff]
        %v320 = vld [vmem:[%s3 + $0x50] sm:$0xff]
        %v321 = vld [vmem:[%s3 + $0x58] sm:$0xff]
        %v322 = vld [vmem:[%s3 + $0x60] sm:$0xff]
        %v323 = vld [vmem:[%s3 + $0x68] sm:$0xff]
        %v324 = vld [vmem:[%s3 + $0x70] sm:$0xff]
        %v325 = vld [vmem:[%s3 + $0x78] sm:$0xff]
        %v326 = vld [vmem:[%s4] sm:$0x1]
        %v328 = vperm.slane %v326, 0
        %330 = vmatpush.msra.mxu0 %v325
        %331 = vmatpush.msra.mxu0 %v324
        %332 = vmatpush.msra.mxu0 %v323
        %333 = vmatpush.msra.mxu0 %v322
        %334 = vmatpush.msra.mxu0 %v321
        %335 = vmatpush.msra.mxu0 %v320
        %336 = vmatpush.msra.mxu0 %v319
        %337 = vmatpush.msra.mxu0 %v318
        %338 = vmatpush.msra.mxu0 %v317
        %339 = vmatpush.msra.mxu0 %v316
        %340 = vmatpush.msra.mxu0 %v315
        %341 = vmatpush.msra.mxu0 %v314
        %342 = vmatpush.msra.mxu0 %v313
        %343 = vmatpush.msra.mxu0 %v312
        %344 = vmatpush.msra.mxu0 %v311
        %345 = vmatpush.msra.mxu0 %v310
        %346 = vmatmul.f32.gmra.mxu0 %v309
        %v347 = vpop.f32.mrf.mxu0
        %v348 = vadd.f32 %v328, %v347
        %349 = vdwg.mxu0
        %vm350 = vcmp.ge.f32.partialorder %v348, 0.0
        %v351 = vmul.f32 %v348, 0.4
        %v352 = vsel %vm350, %v348, %v351
        %v353 = vld [vmem:[%s5] sm:$0xff]
        %v354 = vld [vmem:[%s5 + $0x8] sm:$0xff]
        %v355 = vld [vmem:[%s5 + $0x10] sm:$0xff]
        %v356 = vld [vmem:[%s5 + $0x18] sm:$0xff]
        %v357 = vld [vmem:[%s5 + $0x20] sm:$0xff]
        %v358 = vld [vmem:[%s5 + $0x28] sm:$0xff]
        %v359 = vld [vmem:[%s5 + $0x30] sm:$0xff]
        %v360 = vld [vmem:[%s5 + $0x38] sm:$0xff]
        %v361 = vld [vmem:[%s5 + $0x40] sm:$0xff]
        %v362 = vld [vmem:[%s5 + $0x48] sm:$0xff]
        %v363 = vld [vmem:[%s5 + $0x50] sm:$0xff]
        %v364 = vld [vmem:[%s5 + $0x58] sm:$0xff]
        %v365 = vld [vmem:[%s5 + $0x60] sm:$0xff]
        %v366 = vld [vmem:[%s5 + $0x68] sm:$0xff]
        %v367 = vld [vmem:[%s5 + $0x70] sm:$0xff]
        %v368 = vld [vmem:[%s5 + $0x78] sm:$0xff]
        %v369 = vld [vmem:[%s6] sm:$0x1]
        %v371 = vperm.slane %v369, 0
        %373 = vmatpush.msra.mxu0 %v368
        %374 = vmatpush.msra.mxu0 %v367
        %375 = vmatpush.msra.mxu0 %v366
        %376 = vmatpush.msra.mxu0 %v365
        %377 = vmatpush.msra.mxu0 %v364
        %378 = vmatpush.msra.mxu0 %v363
        %379 = vmatpush.msra.mxu0 %v362
        %380 = vmatpush.msra.mxu0 %v361
        %381 = vmatpush.msra.mxu0 %v360
        %382 = vmatpush.msra.mxu0 %v359
        %383 = vmatpush.msra.mxu0 %v358
        %384 = vmatpush.msra.mxu0 %v357
        %385 = vmatpush.msra.mxu0 %v356
        %386 = vmatpush.msra.mxu0 %v355
        %387 = vmatpush.msra.mxu0 %v354
        %388 = vmatpush.msra.mxu0 %v353
        %389 = vmatmul.f32.gmra.mxu0 %v352
        %v390 = vpop.f32.mrf.mxu0
        %v391 = vadd.f32 %v371, %v390
        %392 = vdwg.mxu0
        %v393 = vxor.u32 %v391, 2147483648
        %v394 = vmul.f32 %v393, 1.442695
        %v395 = vpow.pop %v394
        %v396 = vadd.f32 %v395, 1.0
        %v397 = vrcp.pop %v396
        %v398 = vmul.f32 %v396, %v397
        %v399 = vsub.f32 1.0, %v398
        %v400 = vmul.f32 %v397, %v399
        %v401 = vadd.f32 %v397, %v400
        %vm402 = vweird.f32 %v396
        %vm403 = vweird.f32 %v397
        %vm404 = vmor %vm402, %vm403
        %v405 = vsel %vm404, %v397, %v401
        %v406 = vand.u32 2147483647, %v396
        %vm407 = vcmp.eq.f32.partialorder %v406, 8.507059e+37
        %v408 = vand.u32 %v396, 2147483648
        %v409 = vor.u32 1.1754944e-38, %v408
        %v410 = vsel %vm407, %v409, %v405
        %v411 = vmul.f32 1.0, %v410
        %412 = vst [vmem:[%s269] sm:$0xff] %v411
        %s413 = sand.u32 %s181, 1
        %s414 = scalar_lea.sflag [#allocation3], %s413
        %s415 = sand.u32 %s181, 1
        %s416 = smul.addr %s415, 8
        %s417 = scalar_lea.vmem [#allocation2], %s416
        // Predicated region
        $region49: #{decoder_forward.1} parent=47 // pred_check
          %p418 = pneg %p191
        $region50: #{decoder_forward.1} parent=47 // pred_check_branch
          %420 = sbr.rel (%p418) target = $region52
        $region51: #{decoder_forward.1} parent=47 // pred_region
          %422 = vsyncadd %s414, 0
          %s423 = smul.addr %s21, 8
          %s424 = scalar_lea.hbm %s7, %s423
          %s426 = sshll.u32 %s417, 4
          %s427 = int_to_ptr.vmem [resolvable:$true] %s426
          %s428 = sshll.u32 %s424, 4
          %s429 = int_to_ptr.hbm [resolvable:$true] %s428
          %431 = dma.vmem_to_hbm [thread:$0]  %s427, 128, %s429, %s414
        $region52: #{decoder_forward.1} parent=47 // pred_fallthru
          _
      $region48: #{decoder_forward.1} parent=5 // pred_fallthru
        _
      %p432 = scmp.le.s32.totalorder 2, %s16
      // Predicated region
      $region53: #{decoder_forward.1} parent=5 // pred_check
        %p433 = pneg %p432
      $region54: #{decoder_forward.1} parent=5 // pred_check_branch
        %435 = sbr.rel (%p433) target = $region56
      $region55: #{decoder_forward.1} parent=5 // pred_region
        %s436 = ssub.s32 %s16, 2
        // Predicated region
        $region57: #{decoder_forward.1} parent=55 // pred_check
          %p437 = pneg %p197
        $region58: #{decoder_forward.1} parent=55 // pred_check_branch
          %439 = sbr.rel (%p437) target = $region60
        $region59: #{decoder_forward.1} parent=55 // pred_region
          %s440 = sand.u32 %s182, 1
          %s441 = scalar_lea.sflag [#allocation3], %s440
          %s442 = sand.u32 %s182, 1
          %s443 = smul.addr %s442, 8
          %s444 = scalar_lea.vmem [#allocation2], %s443
          %446 = dma.done %s441, 128
        $region60: #{decoder_forward.1} parent=55 // pred_fallthru
          _
      $region56: #{decoder_forward.1} parent=5 // pred_fallthru
        _
    $region6: #{decoder_forward.1} parent=1 // loop_footer
      %s20 = sadd.s32 1, %s16
    $region7: #{decoder_forward.1} parent=1 // loop_footer_branch
      %15 = sbr.rel target = $region3
    $region8: #{decoder_forward.1} parent=1 // loop_exit
      _
    %447 = vsyncpa [#allocation3], 1
    %s448 = scalar_lea.sflag [#allocation3], 1
    %449 = vsyncpa %s448, 1

</llo_original>
